<compile_context>
chip_gen: v7x
topology: tpu7x:2x2x1
jax: 0.10.0
libtpu: 0.0.40
codegen_flags: <defaults>
</compile_context>

<pallas_src>
import math
import functools

import jax
import jax.numpy as jnp
from jax import lax
from jax.experimental import pallas as pl
from jax.experimental.pallas import tpu as pltpu


_LANE = 128
_MIB = 1024 * 1024
# Finite "-inf" for score masking (avoids NaN from inf - inf under any tiling change).
_NEG_MASK = -0.7 * float(jnp.finfo(jnp.float32).max)
_NEG_INIT = -1e30


def _round_up(x, m):
    return (x + m - 1) // m * m


def _pick_tile(n, target):
    """Largest tile <= target that divides n (prefer multiples of 8)."""
    if n <= target:
        return n
    for t in range(target, 7, -1):
        if n % t == 0 and t % 8 == 0:
            return t
    # TODO(synk): ragged N (no suitable divisor) needs sequence padding + masking.
    return n


def _vmem_capacity_bytes():
    try:
        info = pltpu.get_tpu_info()
        return int(getattr(info, "vmem_capacity_bytes", 128 * _MIB))
    except Exception:
        return 128 * _MIB


# ---------------------------------------------------------------------------
# Kernel 1: fused K/V projection (one wide matmul, weight slab VMEM-resident).
#   x_ref : (1, tn, dim_p)
#   w_ref : (dim_p, 2*inner)   columns = [K heads (h-major) | V heads (h-major)]
#   k/v   : (1, H, tn, d)
# ---------------------------------------------------------------------------
def _kv_proj_kernel(x_ref, w_ref, k_ref, v_ref, *, heads, dim_head):
    inner = heads * dim_head
    y = jnp.dot(x_ref[0], w_ref[...], preferred_element_type=jnp.float32)
    y = y.astype(k_ref.dtype)                              # (tn, 2*inner)
    for h in range(heads):                                  # static unroll: slice-stores
        k_ref[0, h] = y[:, h * dim_head:(h + 1) * dim_head]
        v_ref[0, h] = y[:, inner + h * dim_head: inner + (h + 1) * dim_head]


# ---------------------------------------------------------------------------
# Kernel 2: Q projection + flash attention (online softmax) + fused output proj.
#   x_ref   : (1, tq, dim_p)
#   k_ref   : (1, H, tk, d)
#   v_ref   : (1, H, tk, d)
#   wq_ref  : (dim_p, inner)   scale folded in, constant index -> VMEM resident
#   wout_ref: (inner, dim_p)   W_out^T, constant index -> VMEM resident
#   bout_ref: (1, dim_p)
#   o_ref   : (1, tq, dim_p)
#   scratch : q_scr (H,tq,d), m (H,tq,1), l (H,tq,1), acc (H,tq,d)
# ---------------------------------------------------------------------------
def _flash_attn_kernel(x_ref, k_ref, v_ref, wq_ref, wout_ref, bout_ref, o_ref,
                       q_scr, m_ref, l_ref, acc_ref,
                       *, heads, dim_head, q_tile, kv_tile, causal):
    qi = pl.program_id(1)
    ki = pl.program_id(2)

    @pl.when(ki == 0)
    def _init():
        # Q projection for this q tile (softmax scale already folded into wq).
        # Computed once per (b, qi); amortized over all kv steps, so the Q
        # intermediate never round-trips through HBM.
        q_flat = jnp.dot(x_ref[0], wq_ref[...],
                         preferred_element_type=jnp.float32).astype(q_scr.dtype)
        for h in range(heads):
            q_scr[h] = q_flat[:, h * dim_head:(h + 1) * dim_head]
        m_ref[...] = jnp.full(m_ref.shape, _NEG_INIT, jnp.float32)
        l_ref[...] = jnp.zeros(l_ref.shape, jnp.float32)
        acc_ref[...] = jnp.zeros(acc_ref.shape, jnp.float32)

    def _compute(apply_mask):
        q = q_scr[...]                                      # (H, tq, d)
        k = k_ref[0]                                        # (H, tk, d)
        v = v_ref[0]                                        # (H, tk, d)
        s = jnp.einsum("hqd,hkd->hqk", q, k,
                       preferred_element_type=jnp.float32)  # (H, tq, tk) f32
        if apply_mask:
            row = qi * q_tile + lax.broadcasted_iota(jnp.int32, (q_tile, kv_tile), 0)
            col = ki * kv_tile + lax.broadcasted_iota(jnp.int32, (q_tile, kv_tile), 1)
            masked = (col > row)[None, :, :]
            s = jnp.where(masked, _NEG_MASK, s)
        m_prev = m_ref[...]
        m_new = jnp.maximum(m_prev, jnp.max(s, axis=-1, keepdims=True))
        alpha = jnp.exp(m_prev - m_new)
        p = jnp.exp(s - m_new)                              # (H, tq, tk) f32
        if apply_mask:
            # Explicitly zero masked probabilities: NaN-proof even if a row of this
            # tile is fully masked (robust to future iteration-order / window changes).
            p = jnp.where(masked, 0.0, p)
        l_ref[...] = alpha * l_ref[...] + jnp.sum(p, axis=-1, keepdims=True)
        acc_ref[...] = alpha * acc_ref[...] + jnp.einsum(
            "hqk,hkd->hqd", p.astype(v.dtype), v, preferred_element_type=jnp.float32)
        m_ref[...] = m_new

    if causal:
        first_row = qi * q_tile
        last_row = first_row + (q_tile - 1)
        first_col = ki * kv_tile
        last_col = first_col + (kv_tile - 1)

        # Tiles fully at/below the diagonal: no mask construction, no selects.
        @pl.when(last_col <= first_row)
        def _():
            _compute(False)

        # Diagonal-crossing tiles: apply the causal mask.
        @pl.when(jnp.logical_and(first_col <= last_row, last_col > first_row))
        def _():
            _compute(True)
        # Tiles fully above the diagonal: compute skipped; their K/V DMA is also
        # elided via the clamped index_map in the wrapper.
    else:
        _compute(False)

    @pl.when(ki == pl.num_programs(2) - 1)
    def _finalize():
        o_heads = acc_ref[...] / l_ref[...]                 # (H, tq, d) f32, exact recip
        # 'b h n d -> b n (h d)' lane concat once per q tile, then a single deep
        # matmul for the fused output projection (no per-head matmul loop).
        o_flat = jnp.concatenate([o_heads[h] for h in range(heads)], axis=-1)
        w = wout_ref[...]                                   # (inner, dim_p)
        y = jnp.dot(o_flat.astype(w.dtype), w, preferred_element_type=jnp.float32)
        o_ref[0] = (y + bout_ref[...].astype(jnp.float32)).astype(o_ref.dtype)


# ---------------------------------------------------------------------------
# Wrapper
# ---------------------------------------------------------------------------
def attention_forward(x, w_qkv, w_out, b_out, *, heads, dim_head, causal,
                      q_tile=None, kv_tile=None, n_tile=None, compute_dtype=None):
    """x: (B, N, dim) -> (B, N, dim).  Weights in PyTorch nn.Linear layout:
       w_qkv: (3*inner, dim) (no bias), w_out: (dim, inner), b_out: (dim,).
       compute_dtype=jnp.bfloat16 halves MXU-operand HBM traffic (useful on v5e);
       softmax math stays f32 regardless."""
    B, N, dim = x.shape
    inner = heads * dim_head
    assert w_qkv.shape == (3 * inner, dim)
    assert w_out.shape == (dim, inner)
    scale = dim_head ** (-0.5)
    out_dtype = x.dtype
    cdtype = compute_dtype if compute_dtype is not None else x.dtype

    # Per-generation VMEM budget & default tiles (v7x: 64 MiB physical, v5e/v6e: 128).
    vmem_cap = _vmem_capacity_bytes()
    big_vmem = vmem_cap > 64 * _MIB
    vmem_limit = 96 * _MIB if big_vmem else 40 * _MIB
    if q_tile is None:
        q_tile = 512 if big_vmem else (128 if heads >= 8 else 256)
    if kv_tile is None:
        kv_tile = q_tile
    if n_tile is None:
        n_tile = 512 if big_vmem else 256

    # Only the model dim is padded to a lane multiple; dim_head keeps its natural
    # size (no FLOP / bandwidth / VMEM inflation from padding the head dim).
    dim_p = _round_up(dim, _LANE)
    pad_dim = dim_p - dim

    # ---- one-time wrapper-side weight layout (no in-kernel transposes) ----
    #   wq  : (dim_p, inner)    softmax scale folded in
    #   wkv : (dim_p, 2*inner)  [K | V], head-major within each half
    #   wout: (inner, dim_p)    W_out^T
    wq = jnp.pad(w_qkv[:inner].T * scale, ((0, pad_dim), (0, 0))).astype(cdtype)
    wkv = jnp.pad(w_qkv[inner:].T, ((0, pad_dim), (0, 0))).astype(cdtype)
    wout = jnp.pad(w_out.T, ((0, 0), (0, pad_dim))).astype(cdtype)
    bout = jnp.pad(b_out, ((0, pad_dim),)).reshape(1, dim_p).astype(jnp.float32)
    x_p = jnp.pad(x, ((0, 0), (0, 0), (0, pad_dim))).astype(cdtype)

    tn = _pick_tile(N, n_tile)
    tq = _pick_tile(N, q_tile)
    tk = _pick_tile(N, kv_tile)

    # ---- kernel 1: K/V projection -> (B, H, N, d) each ----
    kv_shape = jax.ShapeDtypeStruct((B, heads, N, dim_head), cdtype)
    kv_kernel = functools.partial(_kv_proj_kernel, heads=heads, dim_head=dim_head)
    k, v = pl.pallas_call(
        kv_kernel,
        out_shape=(kv_shape, kv_shape),
        grid_spec=pltpu.PrefetchScalarGridSpec(
            num_scalar_prefetch=0,
            grid=(B, N // tn),
            in_specs=[
                pl.BlockSpec((1, tn, dim_p), lambda b, i: (b, i, 0)),
                # Constant index_map: weight slab DMA'd from HBM once and kept
                # VMEM-resident across all (b, i) grid steps.
                pl.BlockSpec((dim_p, 2 * inner), lambda b, i: (0, 0)),
            ],
            out_specs=(
                pl.BlockSpec((1, heads, tn, dim_head), lambda b, i: (b, 0, i, 0)),
                pl.BlockSpec((1, heads, tn, dim_head), lambda b, i: (b, 0, i, 0)),
            ),
        ),
        compiler_params=pltpu.CompilerParams(
            dimension_semantics=("parallel", "parallel"),
            vmem_limit_bytes=vmem_limit,
        ),
    )(x_p, wkv)

    # ---- kernel 2: Q projection + flash attention + fused output projection ----
    if causal:
        def kv_idx(b, i, j):
            # Clamp to the last kv tile this q tile actually needs: skipped
            # upper-triangular iterations repeat the previous block index, so no
            # new K/V DMA is issued for them (DMA skip, not just compute skip).
            last_needed = (i * tq + (tq - 1)) // tk
            return (b, 0, jnp.minimum(j, last_needed), 0)
    else:
        def kv_idx(b, i, j):
            return (b, 0, j, 0)

    attn_kernel = functools.partial(
        _flash_attn_kernel, heads=heads, dim_head=dim_head,
        q_tile=tq, kv_tile=tk, causal=causal)

    y_p = pl.pallas_call(
        attn_kernel,
        out_shape=jax.ShapeDtypeStruct((B, N, dim_p), out_dtype),
        grid_spec=pltpu.PrefetchScalarGridSpec(
            num_scalar_prefetch=0,
            grid=(B, N // tq, N // tk),
            in_specs=[
                pl.BlockSpec((1, tq, dim_p), lambda b, i, j: (b, i, 0)),
                pl.BlockSpec((1, heads, tk, dim_head), kv_idx),
                pl.BlockSpec((1, heads, tk, dim_head), kv_idx),
                # Constant index maps: fetched once, stay VMEM-resident.
                # TODO(synk): pipeline_mode=pl.Buffered(1) on these would halve their
                # VMEM footprint on v7x once single-buffering is universally supported.
                pl.BlockSpec((dim_p, inner), lambda b, i, j: (0, 0)),
                pl.BlockSpec((inner, dim_p), lambda b, i, j: (0, 0)),
                pl.BlockSpec((1, dim_p), lambda b, i, j: (0, 0)),
            ],
            out_specs=pl.BlockSpec((1, tq, dim_p), lambda b, i, j: (b, i, 0)),
            scratch_shapes=[
                pltpu.VMEM((heads, tq, dim_head), cdtype),        # per-q-tile Q
                pltpu.VMEM((heads, tq, 1), jnp.float32),          # running max m
                pltpu.VMEM((heads, tq, 1), jnp.float32),          # running sum l
                pltpu.VMEM((heads, tq, dim_head), jnp.float32),   # output accumulator
            ],
        ),
        compiler_params=pltpu.CompilerParams(
            dimension_semantics=("parallel", "parallel", "arbitrary"),
            vmem_limit_bytes=vmem_limit,
        ),
    )(x_p, k, v, wq, wout, bout)

    return y_p[..., :dim]


# ---------------------------------------------------------------------------
# Plain-JAX reference mirroring the PyTorch forward (eval mode, dropout=0).
# ---------------------------------------------------------------------------
def attention_reference(x, w_qkv, w_out, b_out, *, heads, dim_head, causal):
    B, N, dim = x.shape
    inner = heads * dim_head
    scale = dim_head ** (-0.5)
    qkv = jnp.einsum("bnd,od->bno", x, w_qkv)
    q, k, v = jnp.split(qkv, 3, axis=-1)

    def to_heads(t):
        return t.reshape(B, N, heads, dim_head).transpose(0, 2, 1, 3)

    q, k, v = map(to_heads, (q, k, v))
    dots = jnp.einsum("bhqd,bhkd->bhqk", q, k) * scale
    if causal:
        mask = jnp.triu(jnp.ones((N, N), dtype=bool), k=1)
        dots = jnp.where(mask, -jnp.inf, dots)
    attn = jax.nn.softmax(dots, axis=-1)
    out = jnp.einsum("bhqk,bhkd->bhqd", attn, v)
    out = out.transpose(0, 2, 1, 3).reshape(B, N, inner)
    return jnp.einsum("bni,oi->bno", out, w_out) + b_out


if __name__ == "__main__":
    # Small shapes consistent with the module: dim=32, heads=4, dim_head=8 -> inner=32
    B, N, dim = 2, 8, 32
    heads, dim_head = 4, 8
    inner = heads * dim_head
    causal = True

    key = jax.random.PRNGKey(0)
    kx, kq, kw, kb = jax.random.split(key, 4)

    x = jax.random.normal(kx, (B, N, dim), dtype=jnp.float32)

    # Deterministic init mimicking nn.Linear (uniform(-1/sqrt(fan_in), 1/sqrt(fan_in))).
    bound_qkv = 1.0 / math.sqrt(dim)
    w_qkv = jax.random.uniform(kq, (3 * inner, dim), jnp.float32, -bound_qkv, bound_qkv)
    bound_out = 1.0 / math.sqrt(inner)
    w_out = jax.random.uniform(kw, (dim, inner), jnp.float32, -bound_out, bound_out)
    b_out = jax.random.uniform(kb, (dim,), jnp.float32, -bound_out, bound_out)

    y = attention_forward(x, w_qkv, w_out, b_out,
                          heads=heads, dim_head=dim_head, causal=causal)
    y = jax.block_until_ready(y)

    y_ref = attention_reference(x, w_qkv, w_out, b_out,
                                heads=heads, dim_head=dim_head, causal=causal)
    assert y.shape == (B, N, dim)
    assert jnp.allclose(y, y_ref, atol=1e-4, rtol=1e-4), "mismatch vs reference"

    print("KERNEL_OK")
</pallas_src>

<mosaic_0001>
module attributes {stable_mosaic.version = 11 : i64} {
  func.func @_kv_proj_kernel(%arg0: i32, %arg1: i32, %arg2: memref<1x8x128xf32, #tpu.memory_space<vmem>>, %arg3: memref<128x64xf32, #tpu.memory_space<vmem>>, %arg4: memref<1x4x8x8xf32, #tpu.memory_space<vmem>>, %arg5: memref<1x4x8x8xf32, #tpu.memory_space<vmem>>) attributes {dimension_semantics = [#tpu.dimension_semantics<parallel>, #tpu.dimension_semantics<parallel>], iteration_bounds = array<i64: 2, 1>, scalar_prefetch = 0 : i64, scratch_operands = 0 : i64, tpu.core_type = #tpu.core_type<tc>, window_params = [{transform_indices = @transform_0, window_bounds = array<i64: 1, 8, 128>}, {pipeline_mode = #tpu.pipeline_mode<synchronous>, transform_indices = @transform_1, window_bounds = array<i64: 128, 64>}, {transform_indices = @transform_2, window_bounds = array<i64: 1, 4, 8, 8>}, {transform_indices = @transform_3, window_bounds = array<i64: 1, 4, 8, 8>}]} {
    %c0 = arith.constant 0 : index
    %c0_0 = arith.constant 0 : index
    %c0_1 = arith.constant 0 : index
    %0 = vector.load %arg2[%c0, %c0_0, %c0_1] : memref<1x8x128xf32, #tpu.memory_space<vmem>>, vector<1x8x128xf32>
    %1 = vector.shape_cast %0 : vector<1x8x128xf32> to vector<8x128xf32>
    %c0_2 = arith.constant 0 : index
    %c0_3 = arith.constant 0 : index
    %2 = vector.load %arg3[%c0_2, %c0_3] : memref<128x64xf32, #tpu.memory_space<vmem>>, vector<128x64xf32>
    %cst = arith.constant dense<0.000000e+00> : vector<8x64xf32>
    %3 = tpu.matmul %1, %2, %cst {dimension_numbers = #tpu.dot_dimension_numbers<[1], [0], [0], [1], [0, 0, 1, 1], [], []>} : vector<8x128xf32>, vector<128x64xf32>, vector<8x64xf32> -> vector<8x64xf32>
    %4 = vector.extract_strided_slice %3 {offsets = [0, 0], sizes = [8, 8], strides = [1, 1]} : vector<8x64xf32> to vector<8x8xf32>
    %c0_4 = arith.constant 0 : index
    %c0_5 = arith.constant 0 : index
    %c0_6 = arith.constant 0 : index
    %c0_7 = arith.constant 0 : index
    %5 = vector.load %arg4[%c0_4, %c0_5, %c0_6, %c0_7] : memref<1x4x8x8xf32, #tpu.memory_space<vmem>>, vector<1x1x8x8xf32>
    %6 = vector.shape_cast %5 : vector<1x1x8x8xf32> to vector<8x8xf32>
    %7 = vector.shape_cast %4 : vector<8x8xf32> to vector<1x1x8x8xf32>
    tpu.vector_store %arg4[%c0_4, %c0_5, %c0_6, %c0_7], %7 {strides = array<i32>} : memref<1x4x8x8xf32, #tpu.memory_space<vmem>>, vector<1x1x8x8xf32>,
    %8 = vector.extract_strided_slice %3 {offsets = [0, 32], sizes = [8, 8], strides = [1, 1]} : vector<8x64xf32> to vector<8x8xf32>
    %c0_8 = arith.constant 0 : index
    %c0_9 = arith.constant 0 : index
    %c0_10 = arith.constant 0 : index
    %c0_11 = arith.constant 0 : index
    %9 = vector.load %arg5[%c0_8, %c0_9, %c0_10, %c0_11] : memref<1x4x8x8xf32, #tpu.memory_space<vmem>>, vector<1x1x8x8xf32>
    %10 = vector.shape_cast %9 : vector<1x1x8x8xf32> to vector<8x8xf32>
    %11 = vector.shape_cast %8 : vector<8x8xf32> to vector<1x1x8x8xf32>
    tpu.vector_store %arg5[%c0_8, %c0_9, %c0_10, %c0_11], %11 {strides = array<i32>} : memref<1x4x8x8xf32, #tpu.memory_space<vmem>>, vector<1x1x8x8xf32>,
    %12 = vector.extract_strided_slice %3 {offsets = [0, 8], sizes = [8, 8], strides = [1, 1]} : vector<8x64xf32> to vector<8x8xf32>
    %c0_12 = arith.constant 0 : index
    %c1 = arith.constant 1 : index
    %c0_13 = arith.constant 0 : index
    %c0_14 = arith.constant 0 : index
    %13 = vector.load %arg4[%c0_12, %c1, %c0_13, %c0_14] : memref<1x4x8x8xf32, #tpu.memory_space<vmem>>, vector<1x1x8x8xf32>
    %14 = vector.shape_cast %13 : vector<1x1x8x8xf32> to vector<8x8xf32>
    %15 = vector.shape_cast %12 : vector<8x8xf32> to vector<1x1x8x8xf32>
    tpu.vector_store %arg4[%c0_12, %c1, %c0_13, %c0_14], %15 {strides = array<i32>} : memref<1x4x8x8xf32, #tpu.memory_space<vmem>>, vector<1x1x8x8xf32>,
    %16 = vector.extract_strided_slice %3 {offsets = [0, 40], sizes = [8, 8], strides = [1, 1]} : vector<8x64xf32> to vector<8x8xf32>
    %c0_15 = arith.constant 0 : index
    %c1_16 = arith.constant 1 : index
    %c0_17 = arith.constant 0 : index
    %c0_18 = arith.constant 0 : index
    %17 = vector.load %arg5[%c0_15, %c1_16, %c0_17, %c0_18] : memref<1x4x8x8xf32, #tpu.memory_space<vmem>>, vector<1x1x8x8xf32>
    %18 = vector.shape_cast %17 : vector<1x1x8x8xf32> to vector<8x8xf32>
    %19 = vector.shape_cast %16 : vector<8x8xf32> to vector<1x1x8x8xf32>
    tpu.vector_store %arg5[%c0_15, %c1_16, %c0_17, %c0_18], %19 {strides = array<i32>} : memref<1x4x8x8xf32, #tpu.memory_space<vmem>>, vector<1x1x8x8xf32>,
    %20 = vector.extract_strided_slice %3 {offsets = [0, 16], sizes = [8, 8], strides = [1, 1]} : vector<8x64xf32> to vector<8x8xf32>
    %c0_19 = arith.constant 0 : index
    %c2 = arith.constant 2 : index
    %c0_20 = arith.constant 0 : index
    %c0_21 = arith.constant 0 : index
    %21 = vector.load %arg4[%c0_19, %c2, %c0_20, %c0_21] : memref<1x4x8x8xf32, #tpu.memory_space<vmem>>, vector<1x1x8x8xf32>
    %22 = vector.shape_cast %21 : vector<1x1x8x8xf32> to vector<8x8xf32>
    %23 = vector.shape_cast %20 : vector<8x8xf32> to vector<1x1x8x8xf32>
    tpu.vector_store %arg4[%c0_19, %c2, %c0_20, %c0_21], %23 {strides = array<i32>} : memref<1x4x8x8xf32, #tpu.memory_space<vmem>>, vector<1x1x8x8xf32>,
    %24 = vector.extract_strided_slice %3 {offsets = [0, 48], sizes = [8, 8], strides = [1, 1]} : vector<8x64xf32> to vector<8x8xf32>
    %c0_22 = arith.constant 0 : index
    %c2_23 = arith.constant 2 : index
    %c0_24 = arith.constant 0 : index
    %c0_25 = arith.constant 0 : index
    %25 = vector.load %arg5[%c0_22, %c2_23, %c0_24, %c0_25] : memref<1x4x8x8xf32, #tpu.memory_space<vmem>>, vector<1x1x8x8xf32>
    %26 = vector.shape_cast %25 : vector<1x1x8x8xf32> to vector<8x8xf32>
    %27 = vector.shape_cast %24 : vector<8x8xf32> to vector<1x1x8x8xf32>
    tpu.vector_store %arg5[%c0_22, %c2_23, %c0_24, %c0_25], %27 {strides = array<i32>} : memref<1x4x8x8xf32, #tpu.memory_space<vmem>>, vector<1x1x8x8xf32>,
    %28 = vector.extract_strided_slice %3 {offsets = [0, 24], sizes = [8, 8], strides = [1, 1]} : vector<8x64xf32> to vector<8x8xf32>
    %c0_26 = arith.constant 0 : index
    %c3 = arith.constant 3 : index
    %c0_27 = arith.constant 0 : index
    %c0_28 = arith.constant 0 : index
    %29 = vector.load %arg4[%c0_26, %c3, %c0_27, %c0_28] : memref<1x4x8x8xf32, #tpu.memory_space<vmem>>, vector<1x1x8x8xf32>
    %30 = vector.shape_cast %29 : vector<1x1x8x8xf32> to vector<8x8xf32>
    %31 = vector.shape_cast %28 : vector<8x8xf32> to vector<1x1x8x8xf32>
    tpu.vector_store %arg4[%c0_26, %c3, %c0_27, %c0_28], %31 {strides = array<i32>} : memref<1x4x8x8xf32, #tpu.memory_space<vmem>>, vector<1x1x8x8xf32>,
    %32 = vector.extract_strided_slice %3 {offsets = [0, 56], sizes = [8, 8], strides = [1, 1]} : vector<8x64xf32> to vector<8x8xf32>
    %c0_29 = arith.constant 0 : index
    %c3_30 = arith.constant 3 : index
    %c0_31 = arith.constant 0 : index
    %c0_32 = arith.constant 0 : index
    %33 = vector.load %arg5[%c0_29, %c3_30, %c0_31, %c0_32] : memref<1x4x8x8xf32, #tpu.memory_space<vmem>>, vector<1x1x8x8xf32>
    %34 = vector.shape_cast %33 : vector<1x1x8x8xf32> to vector<8x8xf32>
    %35 = vector.shape_cast %32 : vector<8x8xf32> to vector<1x1x8x8xf32>
    tpu.vector_store %arg5[%c0_29, %c3_30, %c0_31, %c0_32], %35 {strides = array<i32>} : memref<1x4x8x8xf32, #tpu.memory_space<vmem>>, vector<1x1x8x8xf32>,
    return
  }
  func.func @transform_0(%arg0: i32, %arg1: i32) -> (i32, i32, i32) {
    %c0_i32 = arith.constant 0 : i32
    %c0_i32_0 = arith.constant 0 : i32
    return %arg0, %arg1, %c0_i32 : i32, i32, i32
  }
  func.func @transform_1(%arg0: i32, %arg1: i32) -> (i32, i32) {
    %c0_i32 = arith.constant 0 : i32
    %c0_i32_0 = arith.constant 0 : i32
    %c0_i32_1 = arith.constant 0 : i32
    return %c0_i32, %c0_i32_0 : i32, i32
  }
  func.func @transform_2(%arg0: i32, %arg1: i32) -> (i32, i32, i32, i32) {
    %c0_i32 = arith.constant 0 : i32
    %c0_i32_0 = arith.constant 0 : i32
    %c0_i32_1 = arith.constant 0 : i32
    return %arg0, %c0_i32, %arg1, %c0_i32_0 : i32, i32, i32, i32
  }
  func.func @transform_3(%arg0: i32, %arg1: i32) -> (i32, i32, i32, i32) {
    %c0_i32 = arith.constant 0 : i32
    %c0_i32_0 = arith.constant 0 : i32
    %c0_i32_1 = arith.constant 0 : i32
    return %arg0, %c0_i32, %arg1, %c0_i32_0 : i32, i32, i32, i32
  }
}

</mosaic_0001>

<llo_original>
// kernel: tpu_custom_call.1
$region0: #{tpu_custom_call.1}
  #allocation0 [shape = 'u32[]', space=smem, size = 0x4, offset = 0x4, fixed_abs, tag = 'smem constant byte address 0x4 - core index']
  #allocation1 [shape = 'u32[144,128]{1,0:T(1,128)}', space=vmem, size = 0x12000, scoped, tag = 'internal scratch']
  %s0 = inlined_call_operand.hbm [shape: f32[2,8,128], index: 0, kind: input, shape index: {}]
  %s1 = inlined_call_operand.hbm [shape: f32[128,64], index: 1, kind: input, shape index: {}]
  %s2 = inlined_call_operand.hbm [shape: f32[2,4,8,8], index: 2, kind: output, shape index: {0}]
  %s3 = inlined_call_operand.hbm [shape: f32[2,4,8,8], index: 3, kind: output, shape index: {1}]
  %4 = xla_tuple %s2, %s3
  %s5 = sld [smem:[#allocation0]]
  $region57: #{tpu_custom_call.1} parent=0
    _
  %s7 = ssub.s32 1, %s5
  %s8 = scalar_select 0, %s7, %s5
  $region1: #{tpu_custom_call.1} parent=0
    #allocation2 [shape = 'u8[8192]{0}', space=vmem, size = 0x2000, scoped, tag = 'input window, operand 0']
    #allocation3 [shape = 's32[2]{0}', space=sflag, size = 0x8, scoped, tag = 'scoped memory for tpu_custom_call.1']
    #allocation4 [shape = 's32[2]{0}', space=sflag, size = 0x8, scoped, tag = 'scoped memory for tpu_custom_call.1']
    #allocation5 [shape = 'u8[65536]{0}', space=vmem, size = 0x10000, scoped, tag = 'input window, operand 1, single buffered']
    #allocation6 [shape = 's32[1]{0}', space=sflag, size = 0x4, scoped, tag = 'scoped memory for tpu_custom_call.1']
    #allocation7 [shape = 'u8[32768]{0}', space=vmem, size = 0x8000, scoped, tag = 'output window, operand 0']
    #allocation8 [shape = 'u8[32768]{0}', space=vmem, size = 0x8000, scoped, tag = 'output window, operand 1']
    #allocation9 [shape = 's32[2]{0}', space=sflag, size = 0x8, scoped, tag = 'scoped memory for tpu_custom_call.1']
    %9 = vsyncpa [#allocation3], 0
    %s10 = scalar_lea.sflag [#allocation3], 1
    %11 = vsyncpa %s10, 0
    %12 = vsyncpa [#allocation6], 0
    %13 = vsyncpa [#allocation4], 0
    %s14 = scalar_lea.sflag [#allocation4], 1
    %15 = vsyncpa %s14, 0
    %16 = vsyncpa [#allocation9], 0
    %s17 = scalar_lea.sflag [#allocation9], 1
    %18 = vsyncpa %s17, 0
    loop: start=0, step=1, limit=4
    $region2: #{tpu_custom_call.1} parent=1 // loop_pre_header
      _
    $region3: #{tpu_custom_call.1} parent=1 // loop_header
      %s20 = sphi 0, %s24
      %p21 = scmp.ge.s32.totalorder %s20, 4
      %s27 = sphi 0, %s39
      %s28 = sphi 0, %s35
      %s29 = sphi 0, %s27
      %s30 = sphi 0, %s28
      %s31 = sphi 0, %s29
      %s32 = sphi 0, %s30
      %s44 = sphi 0, %s46
      %s47 = sphi 0, %s44
      %s48 = sphi 0, %s47
      %s64 = sphi 0, %s48
      %s68 = sphi 0, %s68
      %s70 = sphi 0, %s68
      %s71 = sphi 0, %s70
      %s85 = sphi 0, %s71
      %s93 = sphi 0, %s95
      %s96 = sphi 0, %s93
      %s97 = sphi 0, %s96
      %s113 = sphi 0, %s97
      %s121 = sphi 0, %s123
      %s124 = sphi 0, %s121
      %s125 = sphi 0, %s124
      %s141 = sphi 0, %s125
    $region4: #{tpu_custom_call.1} parent=1 // loop_header_branch
      %23 = sbr.rel (%p21) target = $region8
    $region5: #{tpu_custom_call.1} parent=1 // loop_body
      %s25 = ssub.s32 %s20, 1
      %s26 = ssub.s32 %s20, 2
      %s33 = sadd.s32 1, %s28
      %p34 = scmp.ge.s32.totalorder %s33, 1
      %s35 = scalar_select %p34, 0, %s33
      %s36 = sadd.s32 1, %s27
      %s37 = scalar_select %p34, %s36, %s27
      %p38 = scmp.ge.s32.totalorder %s37, 2
      %s39 = scalar_select %p38, 0, %s37
      %s40 = ssub.s32 %s27, %s39
      %s41 = ssub.s32 %s28, %s35
      %s42 = sor.u32 %s40, %s41
      %p43 = scmp.eq.s32.totalorder %s42, 0
      %s45 = sadd.s32 %s44, 1
      %s46 = scalar_select %p43, %s44, %s45
      %p49 = pneg %p43
      %p50 = scmp.eq.s32.totalorder %s20, 1
      %p51 = por %p49, %p50
      %p52 = scmp.ne.s32.totalorder %s44, %s47
      %p53 = scmp.eq.s32.totalorder %s20, 0
      %p54 = por %p52, %p53
      %p55 = scmp.ne.s32.totalorder %s44, %s47
      %p56 = scmp.eq.s32.totalorder %s25, 1
      %p57 = por %p55, %p56
      %p58 = scmp.ne.s32.totalorder %s47, %s48
      %p59 = scmp.eq.s32.totalorder %s25, 0
      %p60 = por %p58, %p59
      %p61 = scmp.ne.s32.totalorder %s47, %s48
      %p62 = scmp.eq.s32.totalorder %s26, 1
      %p63 = por %p61, %p62
      %p65 = scmp.ne.s32.totalorder %s48, %s64
      %p66 = scmp.eq.s32.totalorder %s26, 0
      %p67 = por %p65, %p66
      %s69 = sadd.s32 %s68, 1
      %p72 = scmp.eq.s32.totalorder %s20, 1
      %p73 = scmp.ne.s32.totalorder %s68, %s70
      %p74 = scmp.eq.s32.totalorder %s20, 0
      %p75 = por %p73, %p74
      %p76 = scmp.ne.s32.totalorder %s68, %s70
      %p77 = scmp.eq.s32.totalorder %s25, 1
      %p78 = por %p76, %p77
      %p79 = scmp.ne.s32.totalorder %s70, %s71
      %p80 = scmp.eq.s32.totalorder %s25, 0
      %p81 = por %p79, %p80
      %p82 = scmp.ne.s32.totalorder %s70, %s71
      %p83 = scmp.eq.s32.totalorder %s26, 1
      %p84 = por %p82, %p83
      %p86 = scmp.ne.s32.totalorder %s71, %s85
      %p87 = scmp.eq.s32.totalorder %s26, 0
      %p88 = por %p86, %p87
      %s89 = ssub.s32 %s27, %s39
      %s90 = ssub.s32 %s28, %s35
      %s91 = sor.u32 %s89, %s90
      %p92 = scmp.eq.s32.totalorder %s91, 0
      %s94 = sadd.s32 %s93, 1
      %s95 = scalar_select %p92, %s93, %s94
      %p98 = pneg %p92
      %p99 = scmp.eq.s32.totalorder %s20, 1
      %p100 = por %p98, %p99
      %p101 = scmp.ne.s32.totalorder %s93, %s96
      %p102 = scmp.eq.s32.totalorder %s20, 0
      %p103 = por %p101, %p102
      %p104 = scmp.ne.s32.totalorder %s93, %s96
      %p105 = scmp.eq.s32.totalorder %s25, 1
      %p106 = por %p104, %p105
      %p107 = scmp.ne.s32.totalorder %s96, %s97
      %p108 = scmp.eq.s32.totalorder %s25, 0
      %p109 = por %p107, %p108
      %p110 = scmp.ne.s32.totalorder %s96, %s97
      %p111 = scmp.eq.s32.totalorder %s26, 1
      %p112 = por %p110, %p111
      %p114 = scmp.ne.s32.totalorder %s97, %s113
      %p115 = scmp.eq.s32.totalorder %s26, 0
      %p116 = por %p114, %p115
      %s117 = ssub.s32 %s27, %s39
      %s118 = ssub.s32 %s28, %s35
      %s119 = sor.u32 %s117, %s118
      %p120 = scmp.eq.s32.totalorder %s119, 0
      %s122 = sadd.s32 %s121, 1
      %s123 = scalar_select %p120, %s121, %s122
      %p126 = pneg %p120
      %p127 = scmp.eq.s32.totalorder %s20, 1
      %p128 = por %p126, %p127
      %p129 = scmp.ne.s32.totalorder %s121, %s124
      %p130 = scmp.eq.s32.totalorder %s20, 0
      %p131 = por %p129, %p130
      %p132 = scmp.ne.s32.totalorder %s121, %s124
      %p133 = scmp.eq.s32.totalorder %s25, 1
      %p134 = por %p132, %p133
      %p135 = scmp.ne.s32.totalorder %s124, %s125
      %p136 = scmp.eq.s32.totalorder %s25, 0
      %p137 = por %p135, %p136
      %p138 = scmp.ne.s32.totalorder %s124, %s125
      %p139 = scmp.eq.s32.totalorder %s26, 1
      %p140 = por %p138, %p139
      %p142 = scmp.ne.s32.totalorder %s125, %s141
      %p143 = scmp.eq.s32.totalorder %s26, 0
      %p144 = por %p142, %p143
      %p145 = scmp.le.s32.totalorder 1, %s20
      %p146 = scmp.lt.s32.totalorder %s20, 3
      %p147 = pnand %p145, %p146
      %p148 = pneg %p147
      // Predicated region
      $region9: #{tpu_custom_call.1} parent=5 // pred_check
        _
      $region10: #{tpu_custom_call.1} parent=5 // pred_check_branch
        %150 = sbr.rel (%p147) target = $region12
      $region11: #{tpu_custom_call.1} parent=5 // pred_region
        %s151 = ssub.s32 %s20, 1
        // Predicated region
        $region13: #{tpu_custom_call.1} parent=11 // pred_check
          %p152 = pneg %p81
        $region14: #{tpu_custom_call.1} parent=11 // pred_check_branch
          %154 = sbr.rel (%p152) target = $region16
        $region15: #{tpu_custom_call.1} parent=11 // pred_region
          %s156 = ssub.s32 2048, 2048
          %157 = vsyncadd [#allocation6], %s156
          %s158 = sshll.u32 [#allocation5], 4
          %s159 = int_to_ptr.vmem [resolvable:$true] %s158
          %164 = dma.hbm_to_vmem [thread:$0]  %s1, 2048, %s159, [#allocation6], 128, 128, 8
        $region16: #{tpu_custom_call.1} parent=11 // pred_fallthru
          _
      $region12: #{tpu_custom_call.1} parent=5 // pred_fallthru
        _
      %p165 = scmp.lt.s32.totalorder %s20, 2
      // Predicated region
      $region17: #{tpu_custom_call.1} parent=5 // pred_check
        %p166 = pneg %p165
      $region18: #{tpu_custom_call.1} parent=5 // pred_check_branch
        %168 = sbr.rel (%p166) target = $region20
      $region19: #{tpu_custom_call.1} parent=5 // pred_region
        // Predicated region
        $region21: #{tpu_custom_call.1} parent=19 // pred_check
          %p169 = pneg %p54
        $region22: #{tpu_custom_call.1} parent=19 // pred_check_branch
          %171 = sbr.rel (%p169) target = $region24
        $region23: #{tpu_custom_call.1} parent=19 // pred_region
          %s172 = sand.u32 %s44, 1
          %s173 = scalar_lea.sflag [#allocation3], %s172
          %s174 = sand.u32 %s44, 1
          %s175 = smul.addr %s174, 8
          %s176 = scalar_lea.vmem [#allocation2], %s175
          %s178 = ssub.s32 128, 128
          %179 = vsyncadd %s173, %s178
          %s180 = sadd.s32 %s28, %s27
          %s181 = smul.addr %s180, 128
          %s182 = scalar_lea.hbm %s0, %s181
          %s184 = sshll.u32 %s176, 4
          %s185 = int_to_ptr.vmem [resolvable:$true] %s184
          %187 = dma.hbm_to_vmem [thread:$0]  %s182, 128, %s185, %s173
        $region24: #{tpu_custom_call.1} parent=19 // pred_fallthru
          _
      $region20: #{tpu_custom_call.1} parent=5 // pred_fallthru
        _
      %p188 = scmp.le.s32.totalorder 1, %s20
      %p189 = scmp.lt.s32.totalorder %s20, 3
      %p190 = pnand %p188, %p189
      %p191 = pneg %p190
      // Predicated region
      $region25: #{tpu_custom_call.1} parent=5 // pred_check
        _
      $region26: #{tpu_custom_call.1} parent=5 // pred_check_branch
        %193 = sbr.rel (%p190) target = $region28
      $region27: #{tpu_custom_call.1} parent=5 // pred_region
        %s194 = ssub.s32 %s20, 1
        %s195 = sand.u32 %s47, 1
        %s196 = scalar_lea.sflag [#allocation3], %s195
        %s197 = sand.u32 %s47, 1
        %s198 = smul.addr %s197, 8
        %s199 = scalar_lea.vmem [#allocation2], %s198
        // Predicated region
        $region29: #{tpu_custom_call.1} parent=27 // pred_check
          %p200 = pneg %p60
        $region30: #{tpu_custom_call.1} parent=27 // pred_check_branch
          %202 = sbr.rel (%p200) target = $region32
        $region31: #{tpu_custom_call.1} parent=27 // pred_region
          %203 = dma.done %s196, 128
        $region32: #{tpu_custom_call.1} parent=27 // pred_fallthru
          _
        // Predicated region
        $region33: #{tpu_custom_call.1} parent=27 // pred_check
          %p204 = pneg %p81
        $region34: #{tpu_custom_call.1} parent=27 // pred_check_branch
          %206 = sbr.rel (%p204) target = $region36
        $region35: #{tpu_custom_call.1} parent=27 // pred_region
          %207 = dma.done [#allocation6], 2048
        $region36: #{tpu_custom_call.1} parent=27 // pred_fallthru
          _
        %s208 = sand.u32 %s47, 1
        %s209 = scalar_lea.sflag [#allocation3], %s208
        %s210 = sand.u32 %s47, 1
        %s211 = smul.addr %s210, 8
        %s212 = scalar_lea.vmem [#allocation2], %s211
        %p213 = pneg %p60
        %p214 = pneg %p57
        %p215 = pneg %p81
        %p216 = pneg %p78
        %p217 = pneg %p109
        %p218 = pneg %p106
        %s219 = sand.u32 %s96, 1
        %s220 = scalar_lea.sflag [#allocation4], %s219
        %s221 = sand.u32 %s96, 1
        %s222 = smul.addr %s221, 32
        %s223 = scalar_lea.vmem [#allocation7], %s222
        %p224 = pneg %p137
        %p225 = pneg %p134
        %s226 = sand.u32 %s124, 1
        %s227 = scalar_lea.sflag [#allocation9], %s226
        %s228 = sand.u32 %s124, 1
        %s229 = smul.addr %s228, 32
        %s230 = scalar_lea.vmem [#allocation8], %s229
        %v231 = vld [vmem:[%s199] sm:$0xff]
        %v232 = vld [vmem:[#allocation5] sm:$0xff]
        %v233 = vld [vmem:[#allocation5 + $0x8] sm:$0xff]
        %v234 = vld [vmem:[#allocation5 + $0x10] sm:$0xff]
        %v235 = vld [vmem:[#allocation5 + $0x18] sm:$0xff]
        %v236 = vld [vmem:[#allocation5 + $0x20] sm:$0xff]
        %v237 = vld [vmem:[#allocation5 + $0x28] sm:$0xff]
        %v238 = vld [vmem:[#allocation5 + $0x30] sm:$0xff]
        %v239 = vld [vmem:[#allocation5 + $0x38] sm:$0xff]
        %v240 = vld [vmem:[#allocation5 + $0x40] sm:$0xff]
        %v241 = vld [vmem:[#allocation5 + $0x48] sm:$0xff]
        %v242 = vld [vmem:[#allocation5 + $0x50] sm:$0xff]
        %v243 = vld [vmem:[#allocation5 + $0x58] sm:$0xff]
        %v244 = vld [vmem:[#allocation5 + $0x60] sm:$0xff]
        %v245 = vld [vmem:[#allocation5 + $0x68] sm:$0xff]
        %v246 = vld [vmem:[#allocation5 + $0x70] sm:$0xff]
        %v247 = vld [vmem:[#allocation5 + $0x78] sm:$0xff]
        %248 = vmatprep.subr.mxu0 0.0
        %249 = vmatpush1.msra.mxu0 %v232
        %250 = vmatprep.subr.mxu0 0.0
        %251 = vmatpush1.msra.mxu0 %v233
        %252 = vmatprep.subr.mxu0 0.0
        %253 = vmatpush1.msra.mxu0 %v234
        %254 = vmatprep.subr.mxu0 0.0
        %255 = vmatpush1.msra.mxu0 %v235
        %256 = vmatprep.subr.mxu0 0.0
        %257 = vmatpush1.msra.mxu0 %v236
        %258 = vmatprep.subr.mxu0 0.0
        %259 = vmatpush1.msra.mxu0 %v237
        %260 = vmatprep.subr.mxu0 0.0
        %261 = vmatpush1.msra.mxu0 %v238
        %262 = vmatprep.subr.mxu0 0.0
        %263 = vmatpush1.msra.mxu0 %v239
        %264 = vmatprep.subr.mxu0 0.0
        %265 = vmatpush1.msra.mxu0 %v240
        %266 = vmatprep.subr.mxu0 0.0
        %267 = vmatpush1.msra.mxu0 %v241
        %268 = vmatprep.subr.mxu0 0.0
        %269 = vmatpush1.msra.mxu0 %v242
        %270 = vmatprep.subr.mxu0 0.0
        %271 = vmatpush1.msra.mxu0 %v243
        %272 = vmatprep.subr.mxu0 0.0
        %273 = vmatpush1.msra.mxu0 %v244
        %274 = vmatprep.subr.mxu0 0.0
        %275 = vmatpush1.msra.mxu0 %v245
        %276 = vmatprep.subr.mxu0 0.0
        %277 = vmatpush1.msra.mxu0 %v246
        %278 = vmatprep.subr.mxu0 0.0
        %279 = vmatpush1.msra.mxu0 %v247
        %280 = vmatprep.subr.mxu0 0.0
        %281 = vmatpush1.msra.mxu0 0.0
        %282 = vmatprep.subr.mxu0 0.0
        %283 = vmatpush1.msra.mxu0 0.0
        %284 = vmatprep.subr.mxu0 0.0
        %285 = vmatpush1.msra.mxu0 0.0
        %286 = vmatprep.subr.mxu0 0.0
        %287 = vmatpush1.msra.mxu0 0.0
        %288 = vmatprep.subr.mxu0 0.0
        %289 = vmatpush1.msra.mxu0 0.0
        %290 = vmatprep.subr.mxu0 0.0
        %291 = vmatpush1.msra.mxu0 0.0
        %292 = vmatprep.subr.mxu0 0.0
        %293 = vmatpush1.msra.mxu0 0.0
        %294 = vmatprep.subr.mxu0 0.0
        %295 = vmatpush1.msra.mxu0 0.0
        %296 = vmatprep.subr.mxu0 0.0
        %297 = vmatpush1.msra.mxu0 0.0
        %298 = vmatprep.subr.mxu0 0.0
        %299 = vmatpush1.msra.mxu0 0.0
        %300 = vmatprep.subr.mxu0 0.0
        %301 = vmatpush1.msra.mxu0 0.0
        %302 = vmatprep.subr.mxu0 0.0
        %303 = vmatpush1.msra.mxu0 0.0
        %304 = vmatprep.subr.mxu0 0.0
        %305 = vmatpush1.msra.mxu0 0.0
        %306 = vmatprep.subr.mxu0 0.0
        %307 = vmatpush1.msra.mxu0 0.0
        %308 = vmatprep.subr.mxu0 0.0
        %309 = vmatpush1.msra.mxu0 0.0
        %310 = vmatprep.subr.mxu0 0.0
        %311 = vmatpush1.msra.mxu0 0.0
        %312 = vmatprep.mubr.f32.mxu0 0.0
        %313 = vmatmul.mubr.f32.gmra.mrb[0].mxu0 %v231
        %v314 = vpop.f32.mrb[0].mxu0
        %v315 = vadd.f32 0.0, %v314
        %v316 = vpop.f32.mrb[0].mxu0
        %317 = vdwg.mxu0
        %vm318 = vcmask 64512
        %319 = vst.msk [vmem:[%s223] sm:$0xff] %vm318, %v315
        %321 = vrot.lane.b32.xlu0 %v315, 96
        %v322 = vpop.permute.xlu0 %321
        %324 = vst.msk [vmem:[%s230] sm:$0xff] %vm318, %v322
        %325 = vrot.lane.b32.xlu0 %v315, 120
        %v326 = vpop.permute.xlu0 %325
        %s328 = scalar_lea.vmem %s223, 8 [#allocation7]
        %329 = vst.msk [vmem:[%s328] sm:$0xff] %vm318, %v326
        %330 = vrot.lane.b32.xlu0 %v315, 88
        %v331 = vpop.permute.xlu0 %330
        %s333 = scalar_lea.vmem %s230, 8 [#allocation8]
        %334 = vst.msk [vmem:[%s333] sm:$0xff] %vm318, %v331
        %335 = vrot.lane.b32.xlu0 %v315, 112
        %v336 = vpop.permute.xlu0 %335
        %s338 = scalar_lea.vmem %s223, 16 [#allocation7]
        %339 = vst.msk [vmem:[%s338] sm:$0xff] %vm318, %v336
        %340 = vrot.lane.b32.xlu0 %v315, 80
        %v341 = vpop.permute.xlu0 %340
        %s343 = scalar_lea.vmem %s230, 16 [#allocation8]
        %344 = vst.msk [vmem:[%s343] sm:$0xff] %vm318, %v341
        %345 = vrot.lane.b32.xlu0 %v315, 104
        %v346 = vpop.permute.xlu0 %345
        %s348 = scalar_lea.vmem %s223, 24 [#allocation7]
        %349 = vst.msk [vmem:[%s348] sm:$0xff] %vm318, %v346
        %350 = vrot.lane.b32.xlu0 %v315, 72
        %v351 = vpop.permute.xlu0 %350
        %s353 = scalar_lea.vmem %s230, 24 [#allocation8]
        %354 = vst.msk [vmem:[%s353] sm:$0xff] %vm318, %v351
        %s355 = sand.u32 %s96, 1
        %s356 = scalar_lea.sflag [#allocation4], %s355
        %s357 = sand.u32 %s96, 1
        %s358 = smul.addr %s357, 32
        %s359 = scalar_lea.vmem [#allocation7], %s358
        %s360 = sand.u32 %s124, 1
        %s361 = scalar_lea.sflag [#allocation9], %s360
        %s362 = sand.u32 %s124, 1
        %s363 = smul.addr %s362, 32
        %s364 = scalar_lea.vmem [#allocation8], %s363
        // Predicated region
        $region37: #{tpu_custom_call.1} parent=27 // pred_check
          %p365 = pneg %p106
        $region38: #{tpu_custom_call.1} parent=27 // pred_check_branch
          %367 = sbr.rel (%p365) target = $region40
        $region39: #{tpu_custom_call.1} parent=27 // pred_region
          %s369 = ssub.s32 512, 512
          %370 = vsyncadd %s356, %s369
          %s371 = smul.addr %s29, 4
          %s372 = sadd.s32 %s30, %s371
          %s373 = smul.addr %s372, 128
          %s374 = scalar_lea.hbm %s2, %s373
          %s375 = sshll.u32 %s359, 4
          %s376 = int_to_ptr.vmem [resolvable:$true] %s375
          %381 = dma.vmem_to_hbm [thread:$0]  %s376, 512, %s374, %s356, 128, 128, 8
        $region40: #{tpu_custom_call.1} parent=27 // pred_fallthru
          _
        // Predicated region
        $region41: #{tpu_custom_call.1} parent=27 // pred_check
          %p382 = pneg %p134
        $region42: #{tpu_custom_call.1} parent=27 // pred_check_branch
          %384 = sbr.rel (%p382) target = $region44
        $region43: #{tpu_custom_call.1} parent=27 // pred_region
          %s386 = ssub.s32 512, 512
          %387 = vsyncadd %s361, %s386
          %s388 = smul.addr %s29, 4
          %s389 = sadd.s32 %s30, %s388
          %s390 = smul.addr %s389, 128
          %s391 = scalar_lea.hbm %s3, %s390
          %s392 = sshll.u32 %s364, 4
          %s393 = int_to_ptr.vmem [resolvable:$true] %s392
          %398 = dma.vmem_to_hbm [thread:$0]  %s393, 512, %s391, %s361, 128, 128, 8
        $region44: #{tpu_custom_call.1} parent=27 // pred_fallthru
          _
      $region28: #{tpu_custom_call.1} parent=5 // pred_fallthru
        _
      %p399 = scmp.le.s32.totalorder 2, %s20
      // Predicated region
      $region45: #{tpu_custom_call.1} parent=5 // pred_check
        %p400 = pneg %p399
      $region46: #{tpu_custom_call.1} parent=5 // pred_check_branch
        %402 = sbr.rel (%p400) target = $region48
      $region47: #{tpu_custom_call.1} parent=5 // pred_region
        %s403 = ssub.s32 %s20, 2
        // Predicated region
        $region49: #{tpu_custom_call.1} parent=47 // pred_check
          %p404 = pneg %p112
        $region50: #{tpu_custom_call.1} parent=47 // pred_check_branch
          %406 = sbr.rel (%p404) target = $region52
        $region51: #{tpu_custom_call.1} parent=47 // pred_region
          %s407 = sand.u32 %s97, 1
          %s408 = scalar_lea.sflag [#allocation4], %s407
          %s409 = sand.u32 %s97, 1
          %s410 = smul.addr %s409, 32
          %s411 = scalar_lea.vmem [#allocation7], %s410
          %412 = dma.done %s408, 512
        $region52: #{tpu_custom_call.1} parent=47 // pred_fallthru
          _
        // Predicated region
        $region53: #{tpu_custom_call.1} parent=47 // pred_check
          %p413 = pneg %p140
        $region54: #{tpu_custom_call.1} parent=47 // pred_check_branch
          %415 = sbr.rel (%p413) target = $region56
        $region55: #{tpu_custom_call.1} parent=47 // pred_region
          %s416 = sand.u32 %s125, 1
          %s417 = scalar_lea.sflag [#allocation9], %s416
          %s418 = sand.u32 %s125, 1
          %s419 = smul.addr %s418, 32
          %s420 = scalar_lea.vmem [#allocation8], %s419
          %421 = dma.done %s417, 512
        $region56: #{tpu_custom_call.1} parent=47 // pred_fallthru
          _
      $region48: #{tpu_custom_call.1} parent=5 // pred_fallthru
        _
    $region6: #{tpu_custom_call.1} parent=1 // loop_footer
      %s24 = sadd.s32 1, %s20
    $region7: #{tpu_custom_call.1} parent=1 // loop_footer_branch
      %19 = sbr.rel target = $region3
    $region8: #{tpu_custom_call.1} parent=1 // loop_exit
      _
    %422 = vsyncpa [#allocation3], 1
    %s423 = scalar_lea.sflag [#allocation3], 1
    %424 = vsyncpa %s423, 1
    %425 = vsyncpa [#allocation6], 1
    %426 = vsyncpa [#allocation4], 1
    %s427 = scalar_lea.sflag [#allocation4], 1
    %428 = vsyncpa %s427, 1
    %429 = vsyncpa [#allocation9], 1
    %s430 = scalar_lea.sflag [#allocation9], 1
    %431 = vsyncpa %s430, 1

</llo_original>
